<compile_context>
chip_gen: v6e
topology: v6e:2x2x1
jax: 0.10.0
libtpu: 0.0.40
codegen_flags: <defaults>
</compile_context>

<pallas_src>
import numpy as np
import jax
import jax.numpy as jnp
from jax.experimental import pallas as pl
from jax.experimental.pallas import tpu as pltpu


# ---------------------------------------------------------------------------
# Static helpers (trace-time only).
# ---------------------------------------------------------------------------
def _compute_new_size(h: int, w: int, min_size: int, max_size: int):
    """Static replica of the wrapper's resize-size logic (int() truncation)."""
    min_orig = float(min(h, w))
    max_orig = float(max(h, w))
    scale = min_size / min_orig
    if max_orig * scale > max_size:
        scale = max_size / max_orig
    return int(scale * h), int(scale * w)


def _bilinear_matrix(in_size: int, out_size: int) -> np.ndarray:
    """Returns W of shape (out_size, in_size) with out = W @ in along one axis.

    Matches PyTorch F.interpolate(mode='bilinear', align_corners=False):
        src = max((o + 0.5) * (in/out) - 0.5, 0)
        i0 = floor(src) (clamped), i1 = min(i0 + 1, in - 1), frac = src - i0
    """
    scale = in_size / out_size
    o = np.arange(out_size, dtype=np.float64)
    src = np.maximum((o + 0.5) * scale - 0.5, 0.0)
    i0 = np.minimum(np.floor(src).astype(np.int64), in_size - 1)
    i1 = np.minimum(i0 + 1, in_size - 1)
    frac = src - i0
    w = np.zeros((out_size, in_size), dtype=np.float32)
    np.add.at(w, (np.arange(out_size), i0), (1.0 - frac).astype(np.float32))
    np.add.at(w, (np.arange(out_size), i1), frac.astype(np.float32))
    return w


# ---------------------------------------------------------------------------
# Pallas kernel: one (batch, channel) plane per grid step.
# ---------------------------------------------------------------------------
def _make_resize_kernel(wh_first: bool):
    def kernel(x_ref, wh_ref, wwt_ref, o_ref):
        img = x_ref[0, 0].astype(jnp.bfloat16)      # (H_in, W_in), cast once
        wh = wh_ref[...]                             # (H_out, H_in)   bf16
        wwt = wwt_ref[...]                           # (W_in, W_out)   bf16
        if wh_first:
            tmp = jnp.dot(wh, img, preferred_element_type=jnp.float32)
            res = jnp.dot(tmp.astype(jnp.bfloat16), wwt,
                          preferred_element_type=jnp.float32)
        else:
            tmp = jnp.dot(img, wwt, preferred_element_type=jnp.float32)
            res = jnp.dot(wh, tmp.astype(jnp.bfloat16),
                          preferred_element_type=jnp.float32)
        o_ref[0, 0] = res.astype(o_ref.dtype)
    return kernel


def maskdino_onnx_wrapper_forward(x: jnp.ndarray,
                                  min_size: int,
                                  max_size: int,
                                  input_format: str = "BGR") -> jnp.ndarray:
    """Pallas implementation of MaskDINOONNXWrapper's own compute.

    x: (N, C, H, W) NCHW (any float/int dtype; cast to bf16 inside the kernel).
    Returns resized_x: (N, C, H_out, W_out) float32 with the BGR channel flip
    applied when input_format == 'BGR' (C == 3), i.e. exactly the tensor the
    PyTorch wrapper hands to self.model.
    """
    n, c, h_in, w_in = x.shape
    h_out, w_out = _compute_new_size(h_in, w_in, min_size, max_size)
    flip = (input_format == "BGR") and (c == 3)

    # For very large inputs, halve the per-channel VMEM block (and the DMA
    # bytes) by downcasting wrapper-side; otherwise DMA the original dtype
    # and cast in-kernel (one HBM pass total).
    plane_bytes = h_in * w_in * x.dtype.itemsize
    if x.dtype.itemsize > 2 and 2 * plane_bytes > 24 * (1 << 20):
        x = x.astype(jnp.bfloat16)
        plane_bytes = h_in * w_in * 2

    # bf16 interpolation matrices (whole-array, single-copy VMEM operands).
    wh = jnp.asarray(_bilinear_matrix(h_in, h_out), dtype=jnp.bfloat16)
    wwt = jnp.asarray(_bilinear_matrix(w_in, w_out).T, dtype=jnp.bfloat16)

    # Static matmul-order selection by MAC count per channel plane.
    macs_wh_first = h_out * h_in * w_in + h_out * w_in * w_out
    macs_ww_first = h_in * w_in * w_out + h_out * h_in * w_out
    wh_first = macs_wh_first <= macs_ww_first
    macs_per_chan = min(macs_wh_first, macs_ww_first)

    kernel = _make_resize_kernel(wh_first)

    # BGR flip handled entirely in the input index_map.
    if flip:
        x_index_map = lambda i, j: (i, (c - 1) - j, 0, 0)
    else:
        x_index_map = lambda i, j: (i, j, 0, 0)

    # Explicit scoped-VMEM budget: double-buffered x/out blocks, single-copy
    # weights, plus in-kernel temporaries.  Cap at 48 MiB (v7x headroom).
    out_block_b = h_out * w_out * 4
    tmp_elems = (h_out * w_in) if wh_first else (h_in * w_out)
    scratch_b = h_in * w_in * 2 + tmp_elems * (4 + 2) + h_out * w_out * 4
    need = 2 * (plane_bytes + out_block_b) + wh.size * 2 + wwt.size * 2 + scratch_b
    vmem_limit = int(min(48 * (1 << 20), max(2 * need, 16 * (1 << 20))))

    cost = pl.CostEstimate(
        flops=2 * n * c * macs_per_chan,
        transcendentals=0,
        bytes_accessed=int(x.size * x.dtype.itemsize + wh.size * 2 + wwt.size * 2
                           + n * c * h_out * w_out * 4),
    )

    out = pl.pallas_call(
        kernel,
        out_shape=jax.ShapeDtypeStruct((n, c, h_out, w_out), jnp.float32),
        grid=(n, c),
        in_specs=[
            # one channel plane per grid step, original dtype, flip in index_map
            pl.BlockSpec((1, 1, h_in, w_in), x_index_map),
            # constant Wh: whole array, single-buffered, resident in VMEM
            pl.BlockSpec(memory_space=pltpu.MemorySpace.VMEM),
            # constant Ww^T: whole array, single-buffered, resident in VMEM
            pl.BlockSpec(memory_space=pltpu.MemorySpace.VMEM),
        ],
        # Exact output shape: H/W block dims equal the full array dims, so no
        # padding and no post-kernel slice pass.
        out_specs=pl.BlockSpec((1, 1, h_out, w_out), lambda i, j: (i, j, 0, 0)),
        compiler_params=pltpu.CompilerParams(
            dimension_semantics=("parallel", "parallel"),
            vmem_limit_bytes=vmem_limit),
        cost_estimate=cost,
    )(x, wh, wwt)

    # TODO(synk): predictions = self.model(inputs) (MaskDINO detector) and the
    # Instances -> (pred_masks, pred_boxes, scores) extraction are an external
    # model not defined in this module; we return the preprocessed tensor.
    return out


# ---------------------------------------------------------------------------
# Pure-JAX f32 reference for the implemented part (same math, no Pallas).
# ---------------------------------------------------------------------------
def _reference(x, min_size, max_size, input_format="BGR"):
    n, c, h_in, w_in = x.shape
    h_out, w_out = _compute_new_size(h_in, w_in, min_size, max_size)
    wh = jnp.asarray(_bilinear_matrix(h_in, h_out))
    ww = jnp.asarray(_bilinear_matrix(w_in, w_out))
    y = jnp.einsum("oh,nchw,pw->ncop", wh, x.astype(jnp.float32), ww)
    if input_format == "BGR" and c == 3:
        y = y[:, ::-1]
    return y


if __name__ == "__main__":
    # Small shapes consistent with the module's forward: NCHW batch, 3 channels
    # (needed for the BGR flip).  Asymmetric H/W exercises both the max_size
    # clamp branch and the unaligned H/W output paths (16x24 -> 21x32).
    N, C, H, W = 2, 3, 16, 24
    MIN_SIZE_TEST, MAX_SIZE_TEST = 24, 32   # cfg.INPUT.MIN/MAX_SIZE_TEST

    key = jax.random.PRNGKey(0)
    x = jax.random.uniform(key, (N, C, H, W), dtype=jnp.float32) * 255.0

    out = maskdino_onnx_wrapper_forward(x, MIN_SIZE_TEST, MAX_SIZE_TEST, "BGR")
    out = jax.block_until_ready(out)

    ref = _reference(x, MIN_SIZE_TEST, MAX_SIZE_TEST, "BGR")
    assert out.shape == ref.shape, (out.shape, ref.shape)
    # Tolerance relaxed for the bf16 MXU path (f32 accumulation): at 0-255
    # image scale the expected error is ~O(1) absolute, which is fine for
    # detector preprocessing.
    np.testing.assert_allclose(np.asarray(out), np.asarray(ref),
                               rtol=3e-2, atol=2.0)

    print("KERNEL_OK")
</pallas_src>

<mosaic_0001>
module attributes {stable_mosaic.version = 11 : i64} {
  func.func @kernel(%arg0: i32, %arg1: i32, %arg2: memref<1x1x16x24xf32, #tpu.memory_space<vmem>>, %arg3: memref<21x16xbf16, #tpu.memory_space<vmem>>, %arg4: memref<24x32xbf16, #tpu.memory_space<vmem>>, %arg5: memref<1x1x21x32xf32, #tpu.memory_space<vmem>>) attributes {dimension_semantics = [#tpu.dimension_semantics<parallel>, #tpu.dimension_semantics<parallel>], iteration_bounds = array<i64: 2, 3>, scalar_prefetch = 0 : i64, scratch_operands = 0 : i64, tpu.core_type = #tpu.core_type<tc>, window_params = [{transform_indices = @transform_0, window_bounds = array<i64: 1, 1, 16, 24>}, {pipeline_mode = #tpu.pipeline_mode<synchronous>, transform_indices = @transform_1, window_bounds = array<i64: 21, 16>}, {pipeline_mode = #tpu.pipeline_mode<synchronous>, transform_indices = @transform_2, window_bounds = array<i64: 24, 32>}, {transform_indices = @transform_3, window_bounds = array<i64: 1, 1, 21, 32>}]} {
    %c0 = arith.constant 0 : index
    %c0_0 = arith.constant 0 : index
    %c0_1 = arith.constant 0 : index
    %c0_2 = arith.constant 0 : index
    %0 = vector.load %arg2[%c0, %c0_0, %c0_1, %c0_2] : memref<1x1x16x24xf32, #tpu.memory_space<vmem>>, vector<1x1x16x24xf32>
    %1 = vector.shape_cast %0 : vector<1x1x16x24xf32> to vector<16x24xf32>
    %2 = arith.truncf %1 : vector<16x24xf32> to vector<16x24xbf16>
    %c0_3 = arith.constant 0 : index
    %c0_4 = arith.constant 0 : index
    %3 = vector.load %arg3[%c0_3, %c0_4] : memref<21x16xbf16, #tpu.memory_space<vmem>>, vector<21x16xbf16>
    %c0_5 = arith.constant 0 : index
    %c0_6 = arith.constant 0 : index
    %4 = vector.load %arg4[%c0_5, %c0_6] : memref<24x32xbf16, #tpu.memory_space<vmem>>, vector<24x32xbf16>
    %cst = arith.constant dense<0.000000e+00> : vector<16x32xf32>
    %5 = tpu.matmul %2, %4, %cst {dimension_numbers = #tpu.dot_dimension_numbers<[1], [0], [0], [1], [0, 0, 1, 1], [], []>} : vector<16x24xbf16>, vector<24x32xbf16>, vector<16x32xf32> -> vector<16x32xf32>
    %6 = arith.truncf %5 : vector<16x32xf32> to vector<16x32xbf16>
    %cst_7 = arith.constant dense<0.000000e+00> : vector<21x32xf32>
    %7 = tpu.matmul %3, %6, %cst_7 {dimension_numbers = #tpu.dot_dimension_numbers<[1], [0], [0], [1], [0, 0, 1, 1], [], []>} : vector<21x16xbf16>, vector<16x32xbf16>, vector<21x32xf32> -> vector<21x32xf32>
    %c0_8 = arith.constant 0 : index
    %c0_9 = arith.constant 0 : index
    %c0_10 = arith.constant 0 : index
    %c0_11 = arith.constant 0 : index
    %8 = vector.load %arg5[%c0_8, %c0_9, %c0_10, %c0_11] : memref<1x1x21x32xf32, #tpu.memory_space<vmem>>, vector<1x1x21x32xf32>
    %9 = vector.shape_cast %8 : vector<1x1x21x32xf32> to vector<21x32xf32>
    %10 = vector.shape_cast %7 : vector<21x32xf32> to vector<1x1x21x32xf32>
    tpu.vector_store %arg5[%c0_8, %c0_9, %c0_10, %c0_11], %10 {strides = array<i32>} : memref<1x1x21x32xf32, #tpu.memory_space<vmem>>, vector<1x1x21x32xf32>,
    return
  }
  func.func @transform_0(%arg0: i32, %arg1: i32) -> (i32, i32, i32, i32) {
    %c2_i32 = arith.constant 2 : i32
    %0 = arith.subi %c2_i32, %arg1 : i32
    %c0_i32 = arith.constant 0 : i32
    %c0_i32_0 = arith.constant 0 : i32
    %c0_i32_1 = arith.constant 0 : i32
    return %arg0, %0, %c0_i32, %c0_i32_0 : i32, i32, i32, i32
  }
  func.func @transform_1(%arg0: i32, %arg1: i32) -> (i32, i32) {
    %c0_i32 = arith.constant 0 : i32
    %c0_i32_0 = arith.constant 0 : i32
    %c0_i32_1 = arith.constant 0 : i32
    return %c0_i32, %c0_i32_0 : i32, i32
  }
  func.func @transform_2(%arg0: i32, %arg1: i32) -> (i32, i32) {
    %c0_i32 = arith.constant 0 : i32
    %c0_i32_0 = arith.constant 0 : i32
    %c0_i32_1 = arith.constant 0 : i32
    return %c0_i32, %c0_i32_0 : i32, i32
  }
  func.func @transform_3(%arg0: i32, %arg1: i32) -> (i32, i32, i32, i32) {
    %c0_i32 = arith.constant 0 : i32
    %c0_i32_0 = arith.constant 0 : i32
    %c0_i32_1 = arith.constant 0 : i32
    return %arg0, %arg1, %c0_i32, %c0_i32_0 : i32, i32, i32, i32
  }
}

</mosaic_0001>

<llo_original>
// kernel: tpu_custom_call.1
$region0: #{tpu_custom_call.1}
  #allocation0 [shape = 'u32[]', space=smem, size = 0x4, offset = 0x4, fixed_abs, tag = 'smem constant byte address 0x4 - core index']
  #allocation1 [shape = 'u32[144,128]{1,0:T(1,128)}', space=vmem, size = 0x12000, scoped, tag = 'internal scratch']
  %s0 = inlined_call_operand.hbm [shape: f32[2,3,16,24], index: 0, kind: input, shape index: {}]
  %s1 = inlined_call_operand.vmem [shape: bf16[21,16], index: 1, kind: input, shape index: {}]
  %s2 = inlined_call_operand.vmem [shape: bf16[24,32], index: 2, kind: input, shape index: {}]
  %s3 = inlined_call_operand.vmem [shape: f32[2,3,21,32], index: 3, kind: output, shape index: {}]
  %s4 = sld [smem:[#allocation0]]
  $region49: #{tpu_custom_call.1} parent=0
    _
  %s6 = ssub.s32 1, %s4
  %s7 = scalar_select 0, %s6, %s4
  $region1: #{tpu_custom_call.1} parent=0
    #allocation2 [shape = 'u8[16384]{0}', space=vmem, size = 0x4000, scoped, tag = 'input window, operand 0']
    #allocation3 [shape = 's32[2]{0}', space=sflag, size = 0x8, scoped, tag = 'scoped memory for tpu_custom_call.1']
    %8 = vsyncpa [#allocation3], 0
    %s9 = scalar_lea.sflag [#allocation3], 1
    %10 = vsyncpa %s9, 0
    loop: start=0, step=1, limit=8
    $region2: #{tpu_custom_call.1} parent=1 // loop_pre_header
      _
    $region3: #{tpu_custom_call.1} parent=1 // loop_header
      %s12 = sphi 0, %s16
      %p13 = scmp.ge.s32.totalorder %s12, 8
      %s19 = sphi 0, %s31
      %s20 = sphi 0, %s27
      %s21 = sphi 0, %s19
      %s22 = sphi 0, %s20
      %s23 = sphi 0, %s21
      %s24 = sphi 0, %s22
      %s38 = sphi 0, %s40
      %s41 = sphi 0, %s38
      %s42 = sphi 0, %s41
      %s58 = sphi 0, %s42
      %s62 = sphi 0, %s62
      %s64 = sphi 0, %s62
      %s65 = sphi 0, %s64
      %s79 = sphi 0, %s65
      %s83 = sphi 0, %s83
      %s85 = sphi 0, %s83
      %s86 = sphi 0, %s85
      %s100 = sphi 0, %s86
      %s108 = sphi 0, %s110
      %s111 = sphi 0, %s108
      %s112 = sphi 0, %s111
      %s128 = sphi 0, %s112
    $region4: #{tpu_custom_call.1} parent=1 // loop_header_branch
      %15 = sbr.rel (%p13) target = $region8
    $region5: #{tpu_custom_call.1} parent=1 // loop_body
      %s17 = ssub.s32 %s12, 1
      %s18 = ssub.s32 %s12, 2
      %s25 = sadd.s32 1, %s20
      %p26 = scmp.ge.s32.totalorder %s25, 3
      %s27 = scalar_select %p26, 0, %s25
      %s28 = sadd.s32 1, %s19
      %s29 = scalar_select %p26, %s28, %s19
      %p30 = scmp.ge.s32.totalorder %s29, 2
      %s31 = scalar_select %p30, 0, %s29
      %s32 = ssub.s32 2, %s20
      %s33 = ssub.s32 2, %s27
      %s34 = ssub.s32 %s19, %s31
      %s35 = ssub.s32 %s32, %s33
      %s36 = sor.u32 %s34, %s35
      %p37 = scmp.eq.s32.totalorder %s36, 0
      %s39 = sadd.s32 %s38, 1
      %s40 = scalar_select %p37, %s38, %s39
      %p43 = pneg %p37
      %p44 = scmp.eq.s32.totalorder %s12, 5
      %p45 = por %p43, %p44
      %p46 = scmp.ne.s32.totalorder %s38, %s41
      %p47 = scmp.eq.s32.totalorder %s12, 0
      %p48 = por %p46, %p47
      %p49 = scmp.ne.s32.totalorder %s38, %s41
      %p50 = scmp.eq.s32.totalorder %s17, 5
      %p51 = por %p49, %p50
      %p52 = scmp.ne.s32.totalorder %s41, %s42
      %p53 = scmp.eq.s32.totalorder %s17, 0
      %p54 = por %p52, %p53
      %p55 = scmp.ne.s32.totalorder %s41, %s42
      %p56 = scmp.eq.s32.totalorder %s18, 5
      %p57 = por %p55, %p56
      %p59 = scmp.ne.s32.totalorder %s42, %s58
      %p60 = scmp.eq.s32.totalorder %s18, 0
      %p61 = por %p59, %p60
      %s63 = sadd.s32 %s62, 1
      %p66 = scmp.eq.s32.totalorder %s12, 5
      %p67 = scmp.ne.s32.totalorder %s62, %s64
      %p68 = scmp.eq.s32.totalorder %s12, 0
      %p69 = por %p67, %p68
      %p70 = scmp.ne.s32.totalorder %s62, %s64
      %p71 = scmp.eq.s32.totalorder %s17, 5
      %p72 = por %p70, %p71
      %p73 = scmp.ne.s32.totalorder %s64, %s65
      %p74 = scmp.eq.s32.totalorder %s17, 0
      %p75 = por %p73, %p74
      %p76 = scmp.ne.s32.totalorder %s64, %s65
      %p77 = scmp.eq.s32.totalorder %s18, 5
      %p78 = por %p76, %p77
      %p80 = scmp.ne.s32.totalorder %s65, %s79
      %p81 = scmp.eq.s32.totalorder %s18, 0
      %p82 = por %p80, %p81
      %s84 = sadd.s32 %s83, 1
      %p87 = scmp.eq.s32.totalorder %s12, 5
      %p88 = scmp.ne.s32.totalorder %s83, %s85
      %p89 = scmp.eq.s32.totalorder %s12, 0
      %p90 = por %p88, %p89
      %p91 = scmp.ne.s32.totalorder %s83, %s85
      %p92 = scmp.eq.s32.totalorder %s17, 5
      %p93 = por %p91, %p92
      %p94 = scmp.ne.s32.totalorder %s85, %s86
      %p95 = scmp.eq.s32.totalorder %s17, 0
      %p96 = por %p94, %p95
      %p97 = scmp.ne.s32.totalorder %s85, %s86
      %p98 = scmp.eq.s32.totalorder %s18, 5
      %p99 = por %p97, %p98
      %p101 = scmp.ne.s32.totalorder %s86, %s100
      %p102 = scmp.eq.s32.totalorder %s18, 0
      %p103 = por %p101, %p102
      %s104 = ssub.s32 %s19, %s31
      %s105 = ssub.s32 %s20, %s27
      %s106 = sor.u32 %s104, %s105
      %p107 = scmp.eq.s32.totalorder %s106, 0
      %s109 = sadd.s32 %s108, 1
      %s110 = scalar_select %p107, %s108, %s109
      %p113 = pneg %p107
      %p114 = scmp.eq.s32.totalorder %s12, 5
      %p115 = por %p113, %p114
      %p116 = scmp.ne.s32.totalorder %s108, %s111
      %p117 = scmp.eq.s32.totalorder %s12, 0
      %p118 = por %p116, %p117
      %p119 = scmp.ne.s32.totalorder %s108, %s111
      %p120 = scmp.eq.s32.totalorder %s17, 5
      %p121 = por %p119, %p120
      %p122 = scmp.ne.s32.totalorder %s111, %s112
      %p123 = scmp.eq.s32.totalorder %s17, 0
      %p124 = por %p122, %p123
      %p125 = scmp.ne.s32.totalorder %s111, %s112
      %p126 = scmp.eq.s32.totalorder %s18, 5
      %p127 = por %p125, %p126
      %p129 = scmp.ne.s32.totalorder %s112, %s128
      %p130 = scmp.eq.s32.totalorder %s18, 0
      %p131 = por %p129, %p130
      %p132 = scmp.le.s32.totalorder 1, %s12
      %p133 = scmp.lt.s32.totalorder %s12, 7
      %p134 = pnand %p132, %p133
      %p135 = pneg %p134
      // Predicated region
      $region9: #{tpu_custom_call.1} parent=5 // pred_check
        _
      $region10: #{tpu_custom_call.1} parent=5 // pred_check_branch
        %137 = sbr.rel (%p134) target = $region12
      $region11: #{tpu_custom_call.1} parent=5 // pred_region
        %s138 = ssub.s32 %s12, 1
        // Predicated region
        $region13: #{tpu_custom_call.1} parent=11 // pred_check
          %p139 = pneg %p75
        $region14: #{tpu_custom_call.1} parent=11 // pred_check_branch
          %141 = sbr.rel (%p139) target = $region16
        $region15: #{tpu_custom_call.1} parent=11 // pred_region
          _
        $region16: #{tpu_custom_call.1} parent=11 // pred_fallthru
          _
        // Predicated region
        $region17: #{tpu_custom_call.1} parent=11 // pred_check
          %p142 = pneg %p96
        $region18: #{tpu_custom_call.1} parent=11 // pred_check_branch
          %144 = sbr.rel (%p142) target = $region20
        $region19: #{tpu_custom_call.1} parent=11 // pred_region
          _
        $region20: #{tpu_custom_call.1} parent=11 // pred_fallthru
          _
      $region12: #{tpu_custom_call.1} parent=5 // pred_fallthru
        _
      %p145 = scmp.lt.s32.totalorder %s12, 6
      // Predicated region
      $region21: #{tpu_custom_call.1} parent=5 // pred_check
        %p146 = pneg %p145
      $region22: #{tpu_custom_call.1} parent=5 // pred_check_branch
        %148 = sbr.rel (%p146) target = $region24
      $region23: #{tpu_custom_call.1} parent=5 // pred_region
        // Predicated region
        $region25: #{tpu_custom_call.1} parent=23 // pred_check
          %p149 = pneg %p48
        $region26: #{tpu_custom_call.1} parent=23 // pred_check_branch
          %151 = sbr.rel (%p149) target = $region28
        $region27: #{tpu_custom_call.1} parent=23 // pred_region
          %s152 = sand.u32 %s38, 1
          %s153 = scalar_lea.sflag [#allocation3], %s152
          %s154 = sand.u32 %s38, 1
          %s155 = smul.addr %s154, 16
          %s156 = scalar_lea.vmem [#allocation2], %s155
          %s157 = ssub.s32 2, %s20
          %s159 = ssub.s32 256, 256
          %160 = vsyncadd %s153, %s159
          %s161 = smul.addr %s157, 2
          %s162 = smul.addr %s19, 6
          %s163 = sadd.s32 %s161, %s162
          %s164 = smul.addr %s163, 128
          %s165 = scalar_lea.hbm %s0, %s164
          %s166 = sshll.u32 %s156, 4
          %s167 = int_to_ptr.vmem [resolvable:$true] %s166
          %172 = dma.hbm_to_vmem [thread:$0]  %s165, 256, %s167, %s153, 128, 128, 8
        $region28: #{tpu_custom_call.1} parent=23 // pred_fallthru
          _
      $region24: #{tpu_custom_call.1} parent=5 // pred_fallthru
        _
      %p173 = scmp.le.s32.totalorder 1, %s12
      %p174 = scmp.lt.s32.totalorder %s12, 7
      %p175 = pnand %p173, %p174
      %p176 = pneg %p175
      // Predicated region
      $region29: #{tpu_custom_call.1} parent=5 // pred_check
        _
      $region30: #{tpu_custom_call.1} parent=5 // pred_check_branch
        %178 = sbr.rel (%p175) target = $region32
      $region31: #{tpu_custom_call.1} parent=5 // pred_region
        %s179 = ssub.s32 %s12, 1
        %s180 = sand.u32 %s41, 1
        %s181 = scalar_lea.sflag [#allocation3], %s180
        %s182 = sand.u32 %s41, 1
        %s183 = smul.addr %s182, 16
        %s184 = scalar_lea.vmem [#allocation2], %s183
        // Predicated region
        $region33: #{tpu_custom_call.1} parent=31 // pred_check
          %p185 = pneg %p54
        $region34: #{tpu_custom_call.1} parent=31 // pred_check_branch
          %187 = sbr.rel (%p185) target = $region36
        $region35: #{tpu_custom_call.1} parent=31 // pred_region
          %188 = dma.done %s181, 256
        $region36: #{tpu_custom_call.1} parent=31 // pred_fallthru
          _
        %s189 = sand.u32 %s41, 1
        %s190 = scalar_lea.sflag [#allocation3], %s189
        %s191 = sand.u32 %s41, 1
        %s192 = smul.addr %s191, 16
        %s193 = scalar_lea.vmem [#allocation2], %s192
        %p194 = pneg %p54
        %p195 = pneg %p51
        %p196 = pneg %p75
        %p197 = pneg %p72
        %p198 = pneg %p96
        %p199 = pneg %p93
        %p200 = pneg %p124
        %p201 = pneg %p121
        %p202 = scmp.lt.s32.totalorder %s21, 1
        %s203 = scalar_select %p202, %s21, 1
        %p204 = scmp.lt.s32.totalorder %s22, 2
        %s205 = scalar_select %p204, %s22, 2
        %s206 = smul.addr %s205, 3
        %s207 = smul.addr %s203, 9
        %s208 = sadd.s32 %s206, %s207
        %s209 = smul.addr %s208, 8
        %s210 = scalar_lea.vmem %s3, %s209
        %s211 = ssub.s32 2, %s22
        %p212 = scmp.lt.s32.totalorder %s21, 1
        %s213 = scalar_select %p212, %s21, 1
        %p214 = scmp.lt.s32.totalorder %s22, 2
        %s215 = scalar_select %p214, %s22, 2
        %s216 = smul.addr %s215, 3
        %s217 = smul.addr %s213, 9
        %s218 = sadd.s32 %s216, %s217
        %s219 = smul.addr %s218, 8
        %s220 = scalar_lea.vmem %s3, %s219
        %v222 = vld [vmem:[%s184] sm:$0xff]
        %v223 = vld [vmem:[%s184 + $0x8] sm:$0xff]
        %v224 = vpack.c.bf16 %v223, %v222
        %v225 = vld [vmem:[%s1] sm:$0xf]
        %v226 = vld [vmem:[%s1 + $0x4] sm:$0xf]
        %v227 = vld [vmem:[%s1 + $0x8] sm:$0x7]
        %v228 = vld [vmem:[%s2] sm:$0xf]
        %v229 = vld [vmem:[%s2 + $0x4] sm:$0xf]
        %v230 = vld [vmem:[%s2 + $0x8] sm:$0xf]
        %v234 = vunpack.c.l.b16 %v228
        %v235 = vunpack.c.l.b16 %v229
        %v236 = vunpack.c.l.b16 %v230
        %v237 = vpack.c.b16 %v235, %v234
        %v238 = vpack.c.b16 %v236, %v236
        %vm240 = vcmask 195584
        %v242 = vsel %vm240, %v224, 0
        %vm244 = vcmask 1043456
        %v246 = vsel %vm244, %v238, 0
        %248 = vmatprep.subr.bf16.mxu0 0
        %249 = vmatpush1.bf16.msra.mxu0 0
        %250 = vmatprep.subr.bf16.mxu0 0
        %251 = vmatpush1.bf16.msra.mxu0 0
        %252 = vmatprep.subr.bf16.mxu0 0
        %253 = vmatpush1.bf16.msra.mxu0 0
        %254 = vmatprep.subr.bf16.mxu0 0
        %255 = vmatpush1.bf16.msra.mxu0 0
        %256 = vmatprep.subr.bf16.mxu0 0
        %257 = vmatpush1.bf16.msra.mxu0 0
        %258 = vmatprep.subr.bf16.mxu0 0
        %259 = vmatpush1.bf16.msra.mxu0 0
        %260 = vmatprep.subr.bf16.mxu0 0
        %261 = vmatpush1.bf16.msra.mxu0 %v246
        %262 = vmatprep.subr.bf16.mxu0 0
        %263 = vmatpush1.bf16.msra.mxu0 %v237
        %264 = vmatprep.subr.bf16.mxu0 0
        %265 = vmatpush2.bf16.msra.mxu0 0
        %266 = vmatprep.subr.bf16.mxu0 0
        %267 = vmatpush2.bf16.msra.mxu0 0
        %268 = vmatprep.subr.bf16.mxu0 0
        %269 = vmatpush2.bf16.msra.mxu0 0
        %270 = vmatprep.subr.bf16.mxu0 0
        %271 = vmatpush2.bf16.msra.mxu0 0
        %272 = vmatprep.subr.bf16.mxu0 0
        %273 = vmatpush2.bf16.msra.mxu0 0
        %274 = vmatprep.subr.bf16.mxu0 0
        %275 = vmatpush2.bf16.msra.mxu0 0
        %276 = vmatprep.subr.bf16.mxu0 0
        %277 = vmatpush2.bf16.msra.mxu0 0
        %278 = vmatprep.subr.bf16.mxu0 0
        %279 = vmatpush2.bf16.msra.mxu0 0
        %280 = vmatprep.mubr.bf16.mxu0 0
        %281 = vmatmul.mubr.bf16.gmra.mxu0 %v242
        %v282 = vpop.f32.mrf.mxu0
        %v283 = vadd.f32 0.0, %v282
        %v284 = vpop.f32.mrf.mxu0
        %v285 = vpop.f32.mrf.mxu0
        %v286 = vadd.f32 0.0, %v285
        %v287 = vpop.f32.mrf.mxu0
        %288 = vdwg.mxu0
        %v289 = vpack.c.bf16 %v286, %v283
        %v293 = vunpack.c.l.b16 %v225
        %v294 = vunpack.c.l.b16 %v226
        %v295 = vunpack.c.l.b16 %v227
        %v296 = vpack.c.b16 %v294, %v293
        %v297 = vpack.c.b16 %v295, %v295
        %vm298 = vcmask 130048
        %v300 = vsel %vm298, %v296, 0
        %v303 = vsel %vm298, %v297, 0
        %305 = vmatprep.subr.bf16.mxu0 0
        %306 = vmatpush1.bf16.msra.mxu0 0
        %307 = vmatprep.subr.bf16.mxu0 0
        %308 = vmatpush1.bf16.msra.mxu0 0
        %309 = vmatprep.subr.bf16.mxu0 0
        %310 = vmatpush1.bf16.msra.mxu0 0
        %311 = vmatprep.subr.bf16.mxu0 0
        %312 = vmatpush1.bf16.msra.mxu0 0
        %313 = vmatprep.subr.bf16.mxu0 0
        %314 = vmatpush1.bf16.msra.mxu0 0
        %315 = vmatprep.subr.bf16.mxu0 0
        %316 = vmatpush1.bf16.msra.mxu0 0
        %317 = vmatprep.subr.bf16.mxu0 0
        %318 = vmatpush1.bf16.msra.mxu0 0
        %319 = vmatprep.subr.bf16.mxu0 0
        %320 = vmatpush1.bf16.msra.mxu0 %v289
        %321 = vmatprep.subr.bf16.mxu0 0
        %322 = vmatpush2.bf16.msra.mxu0 0
        %323 = vmatprep.subr.bf16.mxu0 0
        %324 = vmatpush2.bf16.msra.mxu0 0
        %325 = vmatprep.subr.bf16.mxu0 0
        %326 = vmatpush2.bf16.msra.mxu0 0
        %327 = vmatprep.subr.bf16.mxu0 0
        %328 = vmatpush2.bf16.msra.mxu0 0
        %329 = vmatprep.subr.bf16.mxu0 0
        %330 = vmatpush2.bf16.msra.mxu0 0
        %331 = vmatprep.subr.bf16.mxu0 0
        %332 = vmatpush2.bf16.msra.mxu0 0
        %333 = vmatprep.subr.bf16.mxu0 0
        %334 = vmatpush2.bf16.msra.mxu0 0
        %335 = vmatprep.subr.bf16.mxu0 0
        %336 = vmatpush2.bf16.msra.mxu0 0
        %337 = vmatprep.mubr.bf16.mxu0 0
        %338 = vmatmul.mubr.bf16.gmra.mxu0 %v300
        %v339 = vpop.f32.mrf.mxu0
        %v340 = vadd.f32 0.0, %v339
        %v341 = vpop.f32.mrf.mxu0
        %v342 = vpop.f32.mrf.mxu0
        %v343 = vadd.f32 0.0, %v342
        %v344 = vpop.f32.mrf.mxu0
        %345 = vmatprep.mubr.bf16.mxu0 0
        %346 = vmatmul.mubr.bf16.gmra.mxu0 %v303
        %v347 = vpop.f32.mrf.mxu0
        %v348 = vadd.f32 0.0, %v347
        %v349 = vpop.f32.mrf.mxu0
        %v350 = vpop.f32.mrf.mxu0
        %v351 = vpop.f32.mrf.mxu0
        %352 = vdwg.mxu0
        %vm353 = vcmask 261120
        %354 = vst.msk [vmem:[%s220] sm:$0xff] %vm353, %v340
        %355 = vst.msk [vmem:[%s220 + $0x8] sm:$0xff] %vm353, %v343
        %vm356 = vcmask 258048
        %357 = vst.msk [vmem:[%s220 + $0x10] sm:$0x1f] %vm356, %v348
        %p358 = scmp.lt.s32.totalorder %s21, 1
        %s359 = scalar_select %p358, %s21, 1
        %p360 = scmp.lt.s32.totalorder %s22, 2
        %s361 = scalar_select %p360, %s22, 2
        %s362 = smul.addr %s361, 3
        %s363 = smul.addr %s359, 9
        %s364 = sadd.s32 %s362, %s363
        %s365 = smul.addr %s364, 8
        %s366 = scalar_lea.vmem %s3, %s365
        // Predicated region
        $region37: #{tpu_custom_call.1} parent=31 // pred_check
          %p367 = pneg %p121
        $region38: #{tpu_custom_call.1} parent=31 // pred_check_branch
          %369 = sbr.rel (%p367) target = $region40
        $region39: #{tpu_custom_call.1} parent=31 // pred_region
          _
        $region40: #{tpu_custom_call.1} parent=31 // pred_fallthru
          _
      $region32: #{tpu_custom_call.1} parent=5 // pred_fallthru
        _
      %p370 = scmp.le.s32.totalorder 2, %s12
      // Predicated region
      $region41: #{tpu_custom_call.1} parent=5 // pred_check
        %p371 = pneg %p370
      $region42: #{tpu_custom_call.1} parent=5 // pred_check_branch
        %373 = sbr.rel (%p371) target = $region44
      $region43: #{tpu_custom_call.1} parent=5 // pred_region
        %s374 = ssub.s32 %s12, 2
        // Predicated region
        $region45: #{tpu_custom_call.1} parent=43 // pred_check
          %p375 = pneg %p127
        $region46: #{tpu_custom_call.1} parent=43 // pred_check_branch
          %377 = sbr.rel (%p375) target = $region48
        $region47: #{tpu_custom_call.1} parent=43 // pred_region
          %p378 = scmp.lt.s32.totalorder %s23, 1
          %s379 = scalar_select %p378, %s23, 1
          %p380 = scmp.lt.s32.totalorder %s24, 2
          %s381 = scalar_select %p380, %s24, 2
          %s382 = smul.addr %s381, 3
          %s383 = smul.addr %s379, 9
          %s384 = sadd.s32 %s382, %s383
          %s385 = smul.addr %s384, 8
          %s386 = scalar_lea.vmem %s3, %s385
        $region48: #{tpu_custom_call.1} parent=43 // pred_fallthru
          _
      $region44: #{tpu_custom_call.1} parent=5 // pred_fallthru
        _
    $region6: #{tpu_custom_call.1} parent=1 // loop_footer
      %s16 = sadd.s32 1, %s12
    $region7: #{tpu_custom_call.1} parent=1 // loop_footer_branch
      %11 = sbr.rel target = $region3
    $region8: #{tpu_custom_call.1} parent=1 // loop_exit
      _
    %387 = vsyncpa [#allocation3], 1
    %s388 = scalar_lea.sflag [#allocation3], 1
    %389 = vsyncpa %s388, 1

</llo_original>
